<compile_context>
chip_gen: v5e
topology: v5e:2x2
jax: 0.10.0
libtpu: 0.0.40
codegen_flags: <defaults>
</compile_context>

<pallas_src>
import functools

import jax
import jax.numpy as jnp
from jax.experimental import pallas as pl
from jax.experimental.pallas import tpu as pltpu


def _edge_loss_kernel(ao_ref, bo_ref, co_ref, ag_ref, bg_ref, cg_ref, out_ref):
    # Each input ref: (3, B, TILE_F) float32 — leading axis is x/y/z.
    # out_ref: (1, 1, TILE_F) float32 — per-tile partial sum over batch.
    def edge_len(p_ref, q_ref):
        dx = p_ref[0] - q_ref[0]
        dy = p_ref[1] - q_ref[1]
        dz = p_ref[2] - q_ref[2]
        return jnp.sqrt(dx * dx + dy * dy + dz * dz)  # (B, TILE_F)

    diff = (jnp.abs(edge_len(ao_ref, bo_ref) - edge_len(ag_ref, bg_ref))
            + jnp.abs(edge_len(ao_ref, co_ref) - edge_len(ag_ref, cg_ref))
            + jnp.abs(edge_len(bo_ref, co_ref) - edge_len(bg_ref, cg_ref)))

    # Reduce only the (small) batch/sublane axis here; lanes stay dense.
    out_ref[...] = jnp.sum(diff, axis=0, keepdims=True)[None]  # (1, 1, TILE_F)


def _pick_tile_f(batch, n_faces):
    """Largest 128-multiple face tile that keeps 6 double-buffered input
    tiles (3 coords x padded-batch sublanes x f32) under ~12 MiB VMEM."""
    b_pad = ((max(batch, 1) + 7) // 8) * 8
    bytes_per_lane = 6 * 3 * b_pad * 4 * 2            # 6 inputs, xyz, f32, 2 bufs
    max_tile = (12 * 1024 * 1024) // bytes_per_lane
    max_tile = max(128, (max_tile // 128) * 128)
    tile = min(2048, max_tile)
    f_pad128 = ((n_faces + 127) // 128) * 128
    return min(tile, f_pad128)


@functools.partial(jax.jit, static_argnames=())
def edge_length_loss(coord_out, coord_gt, face):
    """coord_out, coord_gt: (B, V, 3) float; face: (F, 3) int32."""
    coord_out = coord_out.astype(jnp.float32)
    coord_gt = coord_gt.astype(jnp.float32)
    B = coord_out.shape[0]
    F = face.shape[0]

    tile_f = _pick_tile_f(B, F)
    F_pad = pl.cdiv(F, tile_f) * tile_f
    num_tiles = F_pad // tile_f

    # Pad the face table with vertex 0 — padded faces are degenerate for both
    # prediction and GT, so their edge-length diffs are exactly 0.
    face_pad = jnp.pad(face.astype(jnp.int32), ((0, F_pad - F), (0, 0)))

    # One small transpose of the raw coords: (B, V, 3) -> (3, B, V), then
    # gather along the lane axis so no large transposes are materialized.
    co_t = jnp.transpose(coord_out, (2, 0, 1))  # (3, B, V)
    cg_t = jnp.transpose(coord_gt, (2, 0, 1))   # (3, B, V)

    def gather(coord_t, col):
        return coord_t[:, :, face_pad[:, col]]  # (3, B, F_pad)

    ao, bo, co = gather(co_t, 0), gather(co_t, 1), gather(co_t, 2)
    ag, bg, cg = gather(cg_t, 0), gather(cg_t, 1), gather(cg_t, 2)

    in_spec = pl.BlockSpec((3, B, tile_f), lambda i: (0, 0, i))
    out_spec = pl.BlockSpec((1, 1, tile_f), lambda i: (i, 0, 0))

    partials = pl.pallas_call(
        _edge_loss_kernel,
        out_shape=jax.ShapeDtypeStruct((num_tiles, 1, tile_f), jnp.float32),
        grid=(num_tiles,),
        in_specs=[in_spec] * 6,
        out_specs=out_spec,
        compiler_params=pltpu.CompilerParams(
            dimension_semantics=("parallel",)),
    )(ao, bo, co, ag, bg, cg)

    # Tiny final reduction + mean in plain JAX (divisor uses the TRUE F).
    return jnp.sum(partials) / jnp.float32(3 * B * F)


def _reference(coord_out, coord_gt, face):
    # Pure-JAX reference mirroring the PyTorch forward exactly.
    def dist(coord, i, j):
        d = coord[:, face[:, i], :] - coord[:, face[:, j], :]
        return jnp.sqrt(jnp.sum(d ** 2, axis=2, keepdims=True))

    d1o, d2o, d3o = dist(coord_out, 0, 1), dist(coord_out, 0, 2), dist(coord_out, 1, 2)
    d1g, d2g, d3g = dist(coord_gt, 0, 1), dist(coord_gt, 0, 2), dist(coord_gt, 1, 2)
    loss = jnp.concatenate(
        (jnp.abs(d1o - d1g), jnp.abs(d2o - d2g), jnp.abs(d3o - d3g)), axis=1)
    return loss.mean()


if __name__ == "__main__":
    B, V = 2, 16          # batch, number of vertices
    n_faces = 8           # triangle fan over the 16 vertices

    # Deterministic face list (synthetic mesh connectivity).
    face = jnp.stack(
        [jnp.zeros((n_faces,), jnp.int32),
         jnp.arange(1, n_faces + 1, dtype=jnp.int32),
         jnp.arange(2, n_faces + 2, dtype=jnp.int32)],
        axis=1)  # (F, 3)

    key = jax.random.PRNGKey(0)
    k1, k2 = jax.random.split(key)
    coord_out = jax.random.normal(k1, (B, V, 3), dtype=jnp.float32)
    coord_gt = jax.random.normal(k2, (B, V, 3), dtype=jnp.float32)

    loss = edge_length_loss(coord_out, coord_gt, face)
    loss = jax.block_until_ready(loss)

    ref = _reference(coord_out, coord_gt, face)
    assert jnp.allclose(loss, ref, rtol=1e-5, atol=1e-5), (loss, ref)

    print("KERNEL_OK")
</pallas_src>

<mosaic_0001>
module attributes {stable_mosaic.version = 11 : i64} {
  func.func @_edge_loss_kernel(%arg0: i32, %arg1: memref<3x2x128xf32, #tpu.memory_space<vmem>>, %arg2: memref<3x2x128xf32, #tpu.memory_space<vmem>>, %arg3: memref<3x2x128xf32, #tpu.memory_space<vmem>>, %arg4: memref<3x2x128xf32, #tpu.memory_space<vmem>>, %arg5: memref<3x2x128xf32, #tpu.memory_space<vmem>>, %arg6: memref<3x2x128xf32, #tpu.memory_space<vmem>>, %arg7: memref<1x1x128xf32, #tpu.memory_space<vmem>>) attributes {dimension_semantics = [#tpu.dimension_semantics<parallel>], iteration_bounds = array<i64: 1>, scalar_prefetch = 0 : i64, scratch_operands = 0 : i64, tpu.core_type = #tpu.core_type<tc>, window_params = [{transform_indices = @transform_0, window_bounds = array<i64: 3, 2, 128>}, {transform_indices = @transform_1, window_bounds = array<i64: 3, 2, 128>}, {transform_indices = @transform_2, window_bounds = array<i64: 3, 2, 128>}, {transform_indices = @transform_3, window_bounds = array<i64: 3, 2, 128>}, {transform_indices = @transform_4, window_bounds = array<i64: 3, 2, 128>}, {transform_indices = @transform_5, window_bounds = array<i64: 3, 2, 128>}, {transform_indices = @transform_6, window_bounds = array<i64: 1, 1, 128>}]} {
    %c0 = arith.constant 0 : index
    %c0_0 = arith.constant 0 : index
    %c0_1 = arith.constant 0 : index
    %0 = vector.load %arg1[%c0, %c0_0, %c0_1] : memref<3x2x128xf32, #tpu.memory_space<vmem>>, vector<1x2x128xf32>
    %1 = vector.shape_cast %0 : vector<1x2x128xf32> to vector<2x128xf32>
    %c0_2 = arith.constant 0 : index
    %c0_3 = arith.constant 0 : index
    %c0_4 = arith.constant 0 : index
    %2 = vector.load %arg2[%c0_2, %c0_3, %c0_4] : memref<3x2x128xf32, #tpu.memory_space<vmem>>, vector<1x2x128xf32>
    %3 = vector.shape_cast %2 : vector<1x2x128xf32> to vector<2x128xf32>
    %4 = arith.subf %1, %3 : vector<2x128xf32>
    %c1 = arith.constant 1 : index
    %c0_5 = arith.constant 0 : index
    %c0_6 = arith.constant 0 : index
    %5 = vector.load %arg1[%c1, %c0_5, %c0_6] : memref<3x2x128xf32, #tpu.memory_space<vmem>>, vector<1x2x128xf32>
    %6 = vector.shape_cast %5 : vector<1x2x128xf32> to vector<2x128xf32>
    %c1_7 = arith.constant 1 : index
    %c0_8 = arith.constant 0 : index
    %c0_9 = arith.constant 0 : index
    %7 = vector.load %arg2[%c1_7, %c0_8, %c0_9] : memref<3x2x128xf32, #tpu.memory_space<vmem>>, vector<1x2x128xf32>
    %8 = vector.shape_cast %7 : vector<1x2x128xf32> to vector<2x128xf32>
    %9 = arith.subf %6, %8 : vector<2x128xf32>
    %c2 = arith.constant 2 : index
    %c0_10 = arith.constant 0 : index
    %c0_11 = arith.constant 0 : index
    %10 = vector.load %arg1[%c2, %c0_10, %c0_11] : memref<3x2x128xf32, #tpu.memory_space<vmem>>, vector<1x2x128xf32>
    %11 = vector.shape_cast %10 : vector<1x2x128xf32> to vector<2x128xf32>
    %c2_12 = arith.constant 2 : index
    %c0_13 = arith.constant 0 : index
    %c0_14 = arith.constant 0 : index
    %12 = vector.load %arg2[%c2_12, %c0_13, %c0_14] : memref<3x2x128xf32, #tpu.memory_space<vmem>>, vector<1x2x128xf32>
    %13 = vector.shape_cast %12 : vector<1x2x128xf32> to vector<2x128xf32>
    %14 = arith.subf %11, %13 : vector<2x128xf32>
    %15 = arith.mulf %4, %4 : vector<2x128xf32>
    %16 = arith.mulf %9, %9 : vector<2x128xf32>
    %17 = arith.addf %15, %16 : vector<2x128xf32>
    %18 = arith.mulf %14, %14 : vector<2x128xf32>
    %19 = arith.addf %17, %18 : vector<2x128xf32>
    %20 = math.sqrt %19 : vector<2x128xf32>
    %c0_15 = arith.constant 0 : index
    %c0_16 = arith.constant 0 : index
    %c0_17 = arith.constant 0 : index
    %21 = vector.load %arg4[%c0_15, %c0_16, %c0_17] : memref<3x2x128xf32, #tpu.memory_space<vmem>>, vector<1x2x128xf32>
    %22 = vector.shape_cast %21 : vector<1x2x128xf32> to vector<2x128xf32>
    %c0_18 = arith.constant 0 : index
    %c0_19 = arith.constant 0 : index
    %c0_20 = arith.constant 0 : index
    %23 = vector.load %arg5[%c0_18, %c0_19, %c0_20] : memref<3x2x128xf32, #tpu.memory_space<vmem>>, vector<1x2x128xf32>
    %24 = vector.shape_cast %23 : vector<1x2x128xf32> to vector<2x128xf32>
    %25 = arith.subf %22, %24 : vector<2x128xf32>
    %c1_21 = arith.constant 1 : index
    %c0_22 = arith.constant 0 : index
    %c0_23 = arith.constant 0 : index
    %26 = vector.load %arg4[%c1_21, %c0_22, %c0_23] : memref<3x2x128xf32, #tpu.memory_space<vmem>>, vector<1x2x128xf32>
    %27 = vector.shape_cast %26 : vector<1x2x128xf32> to vector<2x128xf32>
    %c1_24 = arith.constant 1 : index
    %c0_25 = arith.constant 0 : index
    %c0_26 = arith.constant 0 : index
    %28 = vector.load %arg5[%c1_24, %c0_25, %c0_26] : memref<3x2x128xf32, #tpu.memory_space<vmem>>, vector<1x2x128xf32>
    %29 = vector.shape_cast %28 : vector<1x2x128xf32> to vector<2x128xf32>
    %30 = arith.subf %27, %29 : vector<2x128xf32>
    %c2_27 = arith.constant 2 : index
    %c0_28 = arith.constant 0 : index
    %c0_29 = arith.constant 0 : index
    %31 = vector.load %arg4[%c2_27, %c0_28, %c0_29] : memref<3x2x128xf32, #tpu.memory_space<vmem>>, vector<1x2x128xf32>
    %32 = vector.shape_cast %31 : vector<1x2x128xf32> to vector<2x128xf32>
    %c2_30 = arith.constant 2 : index
    %c0_31 = arith.constant 0 : index
    %c0_32 = arith.constant 0 : index
    %33 = vector.load %arg5[%c2_30, %c0_31, %c0_32] : memref<3x2x128xf32, #tpu.memory_space<vmem>>, vector<1x2x128xf32>
    %34 = vector.shape_cast %33 : vector<1x2x128xf32> to vector<2x128xf32>
    %35 = arith.subf %32, %34 : vector<2x128xf32>
    %36 = arith.mulf %25, %25 : vector<2x128xf32>
    %37 = arith.mulf %30, %30 : vector<2x128xf32>
    %38 = arith.addf %36, %37 : vector<2x128xf32>
    %39 = arith.mulf %35, %35 : vector<2x128xf32>
    %40 = arith.addf %38, %39 : vector<2x128xf32>
    %41 = math.sqrt %40 : vector<2x128xf32>
    %42 = arith.subf %20, %41 : vector<2x128xf32>
    %43 = math.absf %42 : vector<2x128xf32>
    %c0_33 = arith.constant 0 : index
    %c0_34 = arith.constant 0 : index
    %c0_35 = arith.constant 0 : index
    %44 = vector.load %arg1[%c0_33, %c0_34, %c0_35] : memref<3x2x128xf32, #tpu.memory_space<vmem>>, vector<1x2x128xf32>
    %45 = vector.shape_cast %44 : vector<1x2x128xf32> to vector<2x128xf32>
    %c0_36 = arith.constant 0 : index
    %c0_37 = arith.constant 0 : index
    %c0_38 = arith.constant 0 : index
    %46 = vector.load %arg3[%c0_36, %c0_37, %c0_38] : memref<3x2x128xf32, #tpu.memory_space<vmem>>, vector<1x2x128xf32>
    %47 = vector.shape_cast %46 : vector<1x2x128xf32> to vector<2x128xf32>
    %48 = arith.subf %45, %47 : vector<2x128xf32>
    %c1_39 = arith.constant 1 : index
    %c0_40 = arith.constant 0 : index
    %c0_41 = arith.constant 0 : index
    %49 = vector.load %arg1[%c1_39, %c0_40, %c0_41] : memref<3x2x128xf32, #tpu.memory_space<vmem>>, vector<1x2x128xf32>
    %50 = vector.shape_cast %49 : vector<1x2x128xf32> to vector<2x128xf32>
    %c1_42 = arith.constant 1 : index
    %c0_43 = arith.constant 0 : index
    %c0_44 = arith.constant 0 : index
    %51 = vector.load %arg3[%c1_42, %c0_43, %c0_44] : memref<3x2x128xf32, #tpu.memory_space<vmem>>, vector<1x2x128xf32>
    %52 = vector.shape_cast %51 : vector<1x2x128xf32> to vector<2x128xf32>
    %53 = arith.subf %50, %52 : vector<2x128xf32>
    %c2_45 = arith.constant 2 : index
    %c0_46 = arith.constant 0 : index
    %c0_47 = arith.constant 0 : index
    %54 = vector.load %arg1[%c2_45, %c0_46, %c0_47] : memref<3x2x128xf32, #tpu.memory_space<vmem>>, vector<1x2x128xf32>
    %55 = vector.shape_cast %54 : vector<1x2x128xf32> to vector<2x128xf32>
    %c2_48 = arith.constant 2 : index
    %c0_49 = arith.constant 0 : index
    %c0_50 = arith.constant 0 : index
    %56 = vector.load %arg3[%c2_48, %c0_49, %c0_50] : memref<3x2x128xf32, #tpu.memory_space<vmem>>, vector<1x2x128xf32>
    %57 = vector.shape_cast %56 : vector<1x2x128xf32> to vector<2x128xf32>
    %58 = arith.subf %55, %57 : vector<2x128xf32>
    %59 = arith.mulf %48, %48 : vector<2x128xf32>
    %60 = arith.mulf %53, %53 : vector<2x128xf32>
    %61 = arith.addf %59, %60 : vector<2x128xf32>
    %62 = arith.mulf %58, %58 : vector<2x128xf32>
    %63 = arith.addf %61, %62 : vector<2x128xf32>
    %64 = math.sqrt %63 : vector<2x128xf32>
    %c0_51 = arith.constant 0 : index
    %c0_52 = arith.constant 0 : index
    %c0_53 = arith.constant 0 : index
    %65 = vector.load %arg4[%c0_51, %c0_52, %c0_53] : memref<3x2x128xf32, #tpu.memory_space<vmem>>, vector<1x2x128xf32>
    %66 = vector.shape_cast %65 : vector<1x2x128xf32> to vector<2x128xf32>
    %c0_54 = arith.constant 0 : index
    %c0_55 = arith.constant 0 : index
    %c0_56 = arith.constant 0 : index
    %67 = vector.load %arg6[%c0_54, %c0_55, %c0_56] : memref<3x2x128xf32, #tpu.memory_space<vmem>>, vector<1x2x128xf32>
    %68 = vector.shape_cast %67 : vector<1x2x128xf32> to vector<2x128xf32>
    %69 = arith.subf %66, %68 : vector<2x128xf32>
    %c1_57 = arith.constant 1 : index
    %c0_58 = arith.constant 0 : index
    %c0_59 = arith.constant 0 : index
    %70 = vector.load %arg4[%c1_57, %c0_58, %c0_59] : memref<3x2x128xf32, #tpu.memory_space<vmem>>, vector<1x2x128xf32>
    %71 = vector.shape_cast %70 : vector<1x2x128xf32> to vector<2x128xf32>
    %c1_60 = arith.constant 1 : index
    %c0_61 = arith.constant 0 : index
    %c0_62 = arith.constant 0 : index
    %72 = vector.load %arg6[%c1_60, %c0_61, %c0_62] : memref<3x2x128xf32, #tpu.memory_space<vmem>>, vector<1x2x128xf32>
    %73 = vector.shape_cast %72 : vector<1x2x128xf32> to vector<2x128xf32>
    %74 = arith.subf %71, %73 : vector<2x128xf32>
    %c2_63 = arith.constant 2 : index
    %c0_64 = arith.constant 0 : index
    %c0_65 = arith.constant 0 : index
    %75 = vector.load %arg4[%c2_63, %c0_64, %c0_65] : memref<3x2x128xf32, #tpu.memory_space<vmem>>, vector<1x2x128xf32>
    %76 = vector.shape_cast %75 : vector<1x2x128xf32> to vector<2x128xf32>
    %c2_66 = arith.constant 2 : index
    %c0_67 = arith.constant 0 : index
    %c0_68 = arith.constant 0 : index
    %77 = vector.load %arg6[%c2_66, %c0_67, %c0_68] : memref<3x2x128xf32, #tpu.memory_space<vmem>>, vector<1x2x128xf32>
    %78 = vector.shape_cast %77 : vector<1x2x128xf32> to vector<2x128xf32>
    %79 = arith.subf %76, %78 : vector<2x128xf32>
    %80 = arith.mulf %69, %69 : vector<2x128xf32>
    %81 = arith.mulf %74, %74 : vector<2x128xf32>
    %82 = arith.addf %80, %81 : vector<2x128xf32>
    %83 = arith.mulf %79, %79 : vector<2x128xf32>
    %84 = arith.addf %82, %83 : vector<2x128xf32>
    %85 = math.sqrt %84 : vector<2x128xf32>
    %86 = arith.subf %64, %85 : vector<2x128xf32>
    %87 = math.absf %86 : vector<2x128xf32>
    %88 = arith.addf %43, %87 : vector<2x128xf32>
    %c0_69 = arith.constant 0 : index
    %c0_70 = arith.constant 0 : index
    %c0_71 = arith.constant 0 : index
    %89 = vector.load %arg2[%c0_69, %c0_70, %c0_71] : memref<3x2x128xf32, #tpu.memory_space<vmem>>, vector<1x2x128xf32>
    %90 = vector.shape_cast %89 : vector<1x2x128xf32> to vector<2x128xf32>
    %c0_72 = arith.constant 0 : index
    %c0_73 = arith.constant 0 : index
    %c0_74 = arith.constant 0 : index
    %91 = vector.load %arg3[%c0_72, %c0_73, %c0_74] : memref<3x2x128xf32, #tpu.memory_space<vmem>>, vector<1x2x128xf32>
    %92 = vector.shape_cast %91 : vector<1x2x128xf32> to vector<2x128xf32>
    %93 = arith.subf %90, %92 : vector<2x128xf32>
    %c1_75 = arith.constant 1 : index
    %c0_76 = arith.constant 0 : index
    %c0_77 = arith.constant 0 : index
    %94 = vector.load %arg2[%c1_75, %c0_76, %c0_77] : memref<3x2x128xf32, #tpu.memory_space<vmem>>, vector<1x2x128xf32>
    %95 = vector.shape_cast %94 : vector<1x2x128xf32> to vector<2x128xf32>
    %c1_78 = arith.constant 1 : index
    %c0_79 = arith.constant 0 : index
    %c0_80 = arith.constant 0 : index
    %96 = vector.load %arg3[%c1_78, %c0_79, %c0_80] : memref<3x2x128xf32, #tpu.memory_space<vmem>>, vector<1x2x128xf32>
    %97 = vector.shape_cast %96 : vector<1x2x128xf32> to vector<2x128xf32>
    %98 = arith.subf %95, %97 : vector<2x128xf32>
    %c2_81 = arith.constant 2 : index
    %c0_82 = arith.constant 0 : index
    %c0_83 = arith.constant 0 : index
    %99 = vector.load %arg2[%c2_81, %c0_82, %c0_83] : memref<3x2x128xf32, #tpu.memory_space<vmem>>, vector<1x2x128xf32>
    %100 = vector.shape_cast %99 : vector<1x2x128xf32> to vector<2x128xf32>
    %c2_84 = arith.constant 2 : index
    %c0_85 = arith.constant 0 : index
    %c0_86 = arith.constant 0 : index
    %101 = vector.load %arg3[%c2_84, %c0_85, %c0_86] : memref<3x2x128xf32, #tpu.memory_space<vmem>>, vector<1x2x128xf32>
    %102 = vector.shape_cast %101 : vector<1x2x128xf32> to vector<2x128xf32>
    %103 = arith.subf %100, %102 : vector<2x128xf32>
    %104 = arith.mulf %93, %93 : vector<2x128xf32>
    %105 = arith.mulf %98, %98 : vector<2x128xf32>
    %106 = arith.addf %104, %105 : vector<2x128xf32>
    %107 = arith.mulf %103, %103 : vector<2x128xf32>
    %108 = arith.addf %106, %107 : vector<2x128xf32>
    %109 = math.sqrt %108 : vector<2x128xf32>
    %c0_87 = arith.constant 0 : index
    %c0_88 = arith.constant 0 : index
    %c0_89 = arith.constant 0 : index
    %110 = vector.load %arg5[%c0_87, %c0_88, %c0_89] : memref<3x2x128xf32, #tpu.memory_space<vmem>>, vector<1x2x128xf32>
    %111 = vector.shape_cast %110 : vector<1x2x128xf32> to vector<2x128xf32>
    %c0_90 = arith.constant 0 : index
    %c0_91 = arith.constant 0 : index
    %c0_92 = arith.constant 0 : index
    %112 = vector.load %arg6[%c0_90, %c0_91, %c0_92] : memref<3x2x128xf32, #tpu.memory_space<vmem>>, vector<1x2x128xf32>
    %113 = vector.shape_cast %112 : vector<1x2x128xf32> to vector<2x128xf32>
    %114 = arith.subf %111, %113 : vector<2x128xf32>
    %c1_93 = arith.constant 1 : index
    %c0_94 = arith.constant 0 : index
    %c0_95 = arith.constant 0 : index
    %115 = vector.load %arg5[%c1_93, %c0_94, %c0_95] : memref<3x2x128xf32, #tpu.memory_space<vmem>>, vector<1x2x128xf32>
    %116 = vector.shape_cast %115 : vector<1x2x128xf32> to vector<2x128xf32>
    %c1_96 = arith.constant 1 : index
    %c0_97 = arith.constant 0 : index
    %c0_98 = arith.constant 0 : index
    %117 = vector.load %arg6[%c1_96, %c0_97, %c0_98] : memref<3x2x128xf32, #tpu.memory_space<vmem>>, vector<1x2x128xf32>
    %118 = vector.shape_cast %117 : vector<1x2x128xf32> to vector<2x128xf32>
    %119 = arith.subf %116, %118 : vector<2x128xf32>
    %c2_99 = arith.constant 2 : index
    %c0_100 = arith.constant 0 : index
    %c0_101 = arith.constant 0 : index
    %120 = vector.load %arg5[%c2_99, %c0_100, %c0_101] : memref<3x2x128xf32, #tpu.memory_space<vmem>>, vector<1x2x128xf32>
    %121 = vector.shape_cast %120 : vector<1x2x128xf32> to vector<2x128xf32>
    %c2_102 = arith.constant 2 : index
    %c0_103 = arith.constant 0 : index
    %c0_104 = arith.constant 0 : index
    %122 = vector.load %arg6[%c2_102, %c0_103, %c0_104] : memref<3x2x128xf32, #tpu.memory_space<vmem>>, vector<1x2x128xf32>
    %123 = vector.shape_cast %122 : vector<1x2x128xf32> to vector<2x128xf32>
    %124 = arith.subf %121, %123 : vector<2x128xf32>
    %125 = arith.mulf %114, %114 : vector<2x128xf32>
    %126 = arith.mulf %119, %119 : vector<2x128xf32>
    %127 = arith.addf %125, %126 : vector<2x128xf32>
    %128 = arith.mulf %124, %124 : vector<2x128xf32>
    %129 = arith.addf %127, %128 : vector<2x128xf32>
    %130 = math.sqrt %129 : vector<2x128xf32>
    %131 = arith.subf %109, %130 : vector<2x128xf32>
    %132 = math.absf %131 : vector<2x128xf32>
    %133 = arith.addf %88, %132 : vector<2x128xf32>
    %cst = arith.constant dense<0.000000e+00> : vector<128xf32>
    %134 = vector.multi_reduction <add>, %133, %cst [0] : vector<2x128xf32> to vector<128xf32>
    %135 = vector.shape_cast %134 : vector<128xf32> to vector<1x128xf32>
    %136 = vector.shape_cast %135 : vector<1x128xf32> to vector<1x1x128xf32>
    %c0_105 = arith.constant 0 : index
    %c0_106 = arith.constant 0 : index
    %c0_107 = arith.constant 0 : index
    %137 = vector.load %arg7[%c0_105, %c0_106, %c0_107] : memref<1x1x128xf32, #tpu.memory_space<vmem>>, vector<1x1x128xf32>
    tpu.vector_store %arg7[%c0_105, %c0_106, %c0_107], %136 {strides = array<i32>} : memref<1x1x128xf32, #tpu.memory_space<vmem>>, vector<1x1x128xf32>,
    return
  }
  func.func @transform_0(%arg0: i32) -> (i32, i32, i32) {
    %c0_i32 = arith.constant 0 : i32
    %c0_i32_0 = arith.constant 0 : i32
    %c0_i32_1 = arith.constant 0 : i32
    return %c0_i32, %c0_i32_0, %arg0 : i32, i32, i32
  }
  func.func @transform_1(%arg0: i32) -> (i32, i32, i32) {
    %c0_i32 = arith.constant 0 : i32
    %c0_i32_0 = arith.constant 0 : i32
    %c0_i32_1 = arith.constant 0 : i32
    return %c0_i32, %c0_i32_0, %arg0 : i32, i32, i32
  }
  func.func @transform_2(%arg0: i32) -> (i32, i32, i32) {
    %c0_i32 = arith.constant 0 : i32
    %c0_i32_0 = arith.constant 0 : i32
    %c0_i32_1 = arith.constant 0 : i32
    return %c0_i32, %c0_i32_0, %arg0 : i32, i32, i32
  }
  func.func @transform_3(%arg0: i32) -> (i32, i32, i32) {
    %c0_i32 = arith.constant 0 : i32
    %c0_i32_0 = arith.constant 0 : i32
    %c0_i32_1 = arith.constant 0 : i32
    return %c0_i32, %c0_i32_0, %arg0 : i32, i32, i32
  }
  func.func @transform_4(%arg0: i32) -> (i32, i32, i32) {
    %c0_i32 = arith.constant 0 : i32
    %c0_i32_0 = arith.constant 0 : i32
    %c0_i32_1 = arith.constant 0 : i32
    return %c0_i32, %c0_i32_0, %arg0 : i32, i32, i32
  }
  func.func @transform_5(%arg0: i32) -> (i32, i32, i32) {
    %c0_i32 = arith.constant 0 : i32
    %c0_i32_0 = arith.constant 0 : i32
    %c0_i32_1 = arith.constant 0 : i32
    return %c0_i32, %c0_i32_0, %arg0 : i32, i32, i32
  }
  func.func @transform_6(%arg0: i32) -> (i32, i32, i32) {
    %c0_i32 = arith.constant 0 : i32
    %c0_i32_0 = arith.constant 0 : i32
    %c0_i32_1 = arith.constant 0 : i32
    return %arg0, %c0_i32, %c0_i32_0 : i32, i32, i32
  }
}

</mosaic_0001>

<llo_original>
// kernel: edge_length_loss.1
$region0: #{edge_length_loss.1}
  #allocation0 [shape = 'u32[]', space=smem, size = 0x4, offset = 0x4, fixed_abs, tag = 'smem constant byte address 0x4 - core index']
  #allocation1 [shape = 'u32[72,128]{1,0:T(1,128)}', space=vmem, size = 0x9000, scoped, tag = 'internal scratch']
  %s0 = inlined_call_operand.vmem [shape: f32[3,2,128], index: 0, kind: input, shape index: {}]
  %s1 = inlined_call_operand.vmem [shape: f32[3,2,128], index: 1, kind: input, shape index: {}]
  %s2 = inlined_call_operand.vmem [shape: f32[3,2,128], index: 2, kind: input, shape index: {}]
  %s3 = inlined_call_operand.vmem [shape: f32[3,2,128], index: 3, kind: input, shape index: {}]
  %s4 = inlined_call_operand.vmem [shape: f32[3,2,128], index: 4, kind: input, shape index: {}]
  %s5 = inlined_call_operand.vmem [shape: f32[3,2,128], index: 5, kind: input, shape index: {}]
  %s6 = inlined_call_operand.vmem [shape: f32[1,1,128], index: 6, kind: output, shape index: {}]
  %s7 = sld [smem:[#allocation0]]
  $region34: #{edge_length_loss.1} parent=0
    _
  %s9 = ssub.s32 1, %s7
  %s10 = scalar_select 0, %s9, %s7
  // Predicated region
  $region2: #{edge_length_loss.1} parent=0 // pred_check
    _
  $region3: #{edge_length_loss.1} parent=0 // pred_check_branch
    %12 = sbr.rel (0) target = $region5
  $region4: #{edge_length_loss.1} parent=0 // pred_region
    _
  $region5: #{edge_length_loss.1} parent=0 // pred_fallthru
    _
  // Predicated region
  $region6: #{edge_length_loss.1} parent=0 // pred_check
    _
  $region7: #{edge_length_loss.1} parent=0 // pred_check_branch
    %14 = sbr.rel (0) target = $region9
  $region8: #{edge_length_loss.1} parent=0 // pred_region
    _
  $region9: #{edge_length_loss.1} parent=0 // pred_fallthru
    _
  // Predicated region
  $region10: #{edge_length_loss.1} parent=0 // pred_check
    _
  $region11: #{edge_length_loss.1} parent=0 // pred_check_branch
    %16 = sbr.rel (0) target = $region13
  $region12: #{edge_length_loss.1} parent=0 // pred_region
    _
  $region13: #{edge_length_loss.1} parent=0 // pred_fallthru
    _
  // Predicated region
  $region14: #{edge_length_loss.1} parent=0 // pred_check
    _
  $region15: #{edge_length_loss.1} parent=0 // pred_check_branch
    %18 = sbr.rel (0) target = $region17
  $region16: #{edge_length_loss.1} parent=0 // pred_region
    _
  $region17: #{edge_length_loss.1} parent=0 // pred_fallthru
    _
  // Predicated region
  $region18: #{edge_length_loss.1} parent=0 // pred_check
    _
  $region19: #{edge_length_loss.1} parent=0 // pred_check_branch
    %20 = sbr.rel (0) target = $region21
  $region20: #{edge_length_loss.1} parent=0 // pred_region
    _
  $region21: #{edge_length_loss.1} parent=0 // pred_fallthru
    _
  // Predicated region
  $region22: #{edge_length_loss.1} parent=0 // pred_check
    _
  $region23: #{edge_length_loss.1} parent=0 // pred_check_branch
    %22 = sbr.rel (0) target = $region25
  $region24: #{edge_length_loss.1} parent=0 // pred_region
    _
  $region25: #{edge_length_loss.1} parent=0 // pred_fallthru
    _
  %v23 = vld [vmem:[%s0] sm:$0x3]
  %v24 = vld [vmem:[%s1] sm:$0x3]
  %v25 = vsub.f32 %v23, %v24
  %s26 = scalar_lea.vmem %s0, 2
  %v27 = vld [vmem:[%s26] sm:$0x3]
  %s28 = scalar_lea.vmem %s1, 2
  %v29 = vld [vmem:[%s28] sm:$0x3]
  %v30 = vsub.f32 %v27, %v29
  %s31 = scalar_lea.vmem %s0, 4
  %v32 = vld [vmem:[%s31] sm:$0x3]
  %s33 = scalar_lea.vmem %s1, 4
  %v34 = vld [vmem:[%s33] sm:$0x3]
  %v35 = vsub.f32 %v32, %v34
  %v36 = vmul.f32 %v25, %v25
  %v37 = vmul.f32 %v30, %v30
  %v38 = vadd.f32 %v36, %v37
  %v39 = vmul.f32 %v35, %v35
  %v40 = vadd.f32 %v38, %v39
  %v41 = vrsqrt.pop %v40
  %v42 = vmul.f32 %v41, %v40
  %v43 = vmul.f32 %v42, %v41
  %v44 = vmul.f32 0.5, %v43
  %v45 = vsub.f32 1.5, %v44
  %v46 = vmul.f32 %v41, %v45
  %v47 = vmul.f32 %v40, %v46
  %vm48 = vcmp.eq.f32.partialorder %v40, inf
  %v49 = vsel %vm48, %v40, %v47
  %vm50 = vcmp.eq.f32.partialorder %v40, 0.0
  %v51 = vand.u32 %v40, 2147483648
  %v52 = vsel %vm50, %v51, %v49
  %v53 = vld [vmem:[%s3] sm:$0x3]
  %v54 = vld [vmem:[%s4] sm:$0x3]
  %v55 = vsub.f32 %v53, %v54
  %s56 = scalar_lea.vmem %s3, 2
  %v57 = vld [vmem:[%s56] sm:$0x3]
  %s58 = scalar_lea.vmem %s4, 2
  %v59 = vld [vmem:[%s58] sm:$0x3]
  %v60 = vsub.f32 %v57, %v59
  %s61 = scalar_lea.vmem %s3, 4
  %v62 = vld [vmem:[%s61] sm:$0x3]
  %s63 = scalar_lea.vmem %s4, 4
  %v64 = vld [vmem:[%s63] sm:$0x3]
  %v65 = vsub.f32 %v62, %v64
  %v66 = vmul.f32 %v55, %v55
  %v67 = vmul.f32 %v60, %v60
  %v68 = vadd.f32 %v66, %v67
  %v69 = vmul.f32 %v65, %v65
  %v70 = vadd.f32 %v68, %v69
  %v71 = vrsqrt.pop %v70
  %v72 = vmul.f32 %v71, %v70
  %v73 = vmul.f32 %v72, %v71
  %v74 = vmul.f32 0.5, %v73
  %v75 = vsub.f32 1.5, %v74
  %v76 = vmul.f32 %v71, %v75
  %v77 = vmul.f32 %v70, %v76
  %vm78 = vcmp.eq.f32.partialorder %v70, inf
  %v79 = vsel %vm78, %v70, %v77
  %vm80 = vcmp.eq.f32.partialorder %v70, 0.0
  %v81 = vand.u32 %v70, 2147483648
  %v82 = vsel %vm80, %v81, %v79
  %v83 = vsub.f32 %v52, %v82
  %v84 = vand.u32 2147483647, %v83
  %v85 = vld [vmem:[%s2] sm:$0x3]
  %v86 = vsub.f32 %v23, %v85
  %s87 = scalar_lea.vmem %s2, 2
  %v88 = vld [vmem:[%s87] sm:$0x3]
  %v89 = vsub.f32 %v27, %v88
  %s90 = scalar_lea.vmem %s2, 4
  %v91 = vld [vmem:[%s90] sm:$0x3]
  %v92 = vsub.f32 %v32, %v91
  %v93 = vmul.f32 %v86, %v86
  %v94 = vmul.f32 %v89, %v89
  %v95 = vadd.f32 %v93, %v94
  %v96 = vmul.f32 %v92, %v92
  %v97 = vadd.f32 %v95, %v96
  %v98 = vrsqrt.pop %v97
  %v99 = vmul.f32 %v98, %v97
  %v100 = vmul.f32 %v99, %v98
  %v101 = vmul.f32 0.5, %v100
  %v102 = vsub.f32 1.5, %v101
  %v103 = vmul.f32 %v98, %v102
  %v104 = vmul.f32 %v97, %v103
  %vm105 = vcmp.eq.f32.partialorder %v97, inf
  %v106 = vsel %vm105, %v97, %v104
  %vm107 = vcmp.eq.f32.partialorder %v97, 0.0
  %v108 = vand.u32 %v97, 2147483648
  %v109 = vsel %vm107, %v108, %v106
  %v110 = vld [vmem:[%s5] sm:$0x3]
  %v111 = vsub.f32 %v53, %v110
  %s112 = scalar_lea.vmem %s5, 2
  %v113 = vld [vmem:[%s112] sm:$0x3]
  %v114 = vsub.f32 %v57, %v113
  %s115 = scalar_lea.vmem %s5, 4
  %v116 = vld [vmem:[%s115] sm:$0x3]
  %v117 = vsub.f32 %v62, %v116
  %v118 = vmul.f32 %v111, %v111
  %v119 = vmul.f32 %v114, %v114
  %v120 = vadd.f32 %v118, %v119
  %v121 = vmul.f32 %v117, %v117
  %v122 = vadd.f32 %v120, %v121
  %v123 = vrsqrt.pop %v122
  %v124 = vmul.f32 %v123, %v122
  %v125 = vmul.f32 %v124, %v123
  %v126 = vmul.f32 0.5, %v125
  %v127 = vsub.f32 1.5, %v126
  %v128 = vmul.f32 %v123, %v127
  %v129 = vmul.f32 %v122, %v128
  %vm130 = vcmp.eq.f32.partialorder %v122, inf
  %v131 = vsel %vm130, %v122, %v129
  %vm132 = vcmp.eq.f32.partialorder %v122, 0.0
  %v133 = vand.u32 %v122, 2147483648
  %v134 = vsel %vm132, %v133, %v131
  %v135 = vsub.f32 %v109, %v134
  %v136 = vand.u32 2147483647, %v135
  %v137 = vadd.f32 %v84, %v136
  %v138 = vsub.f32 %v24, %v85
  %v139 = vsub.f32 %v29, %v88
  %v140 = vsub.f32 %v34, %v91
  %v141 = vmul.f32 %v138, %v138
  %v142 = vmul.f32 %v139, %v139
  %v143 = vadd.f32 %v141, %v142
  %v144 = vmul.f32 %v140, %v140
  %v145 = vadd.f32 %v143, %v144
  %v146 = vrsqrt.pop %v145
  %v147 = vmul.f32 %v146, %v145
  %v148 = vmul.f32 %v147, %v146
  %v149 = vmul.f32 0.5, %v148
  %v150 = vsub.f32 1.5, %v149
  %v151 = vmul.f32 %v146, %v150
  %v152 = vmul.f32 %v145, %v151
  %vm153 = vcmp.eq.f32.partialorder %v145, inf
  %v154 = vsel %vm153, %v145, %v152
  %vm155 = vcmp.eq.f32.partialorder %v145, 0.0
  %v156 = vand.u32 %v145, 2147483648
  %v157 = vsel %vm155, %v156, %v154
  %v158 = vsub.f32 %v54, %v110
  %v159 = vsub.f32 %v59, %v113
  %v160 = vsub.f32 %v64, %v116
  %v161 = vmul.f32 %v158, %v158
  %v162 = vmul.f32 %v159, %v159
  %v163 = vadd.f32 %v161, %v162
  %v164 = vmul.f32 %v160, %v160
  %v165 = vadd.f32 %v163, %v164
  %v166 = vrsqrt.pop %v165
  %v167 = vmul.f32 %v166, %v165
  %v168 = vmul.f32 %v167, %v166
  %v169 = vmul.f32 0.5, %v168
  %v170 = vsub.f32 1.5, %v169
  %v171 = vmul.f32 %v166, %v170
  %v172 = vmul.f32 %v165, %v171
  %vm173 = vcmp.eq.f32.partialorder %v165, inf
  %v174 = vsel %vm173, %v165, %v172
  %vm175 = vcmp.eq.f32.partialorder %v165, 0.0
  %v176 = vand.u32 %v165, 2147483648
  %v177 = vsel %vm175, %v176, %v174
  %v178 = vsub.f32 %v157, %v177
  %v179 = vand.u32 2147483647, %v178
  %v180 = vadd.f32 %v137, %v179
  %vm181 = vcmask 1041408
  %v182 = vsel %vm181, %v180, 0.0
  %v183 = vrot.slane %v182, 4
  %v184 = vadd.f32 %v182, %v183
  %v185 = vrot.slane %v184, 2
  %v186 = vadd.f32 %v184, %v185
  %v187 = vrot.slane %v186, 1
  %v188 = vadd.f32 %v186, %v187
  %189 = vst [vmem:[%s6] sm:$0x1] %v188
  // Predicated region
  $region26: #{edge_length_loss.1} parent=0 // pred_check
    _
  $region27: #{edge_length_loss.1} parent=0 // pred_check_branch
    %191 = sbr.rel (0) target = $region29
  $region28: #{edge_length_loss.1} parent=0 // pred_region
    _
  $region29: #{edge_length_loss.1} parent=0 // pred_fallthru
    _
  // Predicated region
  $region30: #{edge_length_loss.1} parent=0 // pred_check
    _
  $region31: #{edge_length_loss.1} parent=0 // pred_check_branch
    %193 = sbr.rel (0) target = $region33
  $region32: #{edge_length_loss.1} parent=0 // pred_region
    _
  $region33: #{edge_length_loss.1} parent=0 // pred_fallthru
    _

</llo_original>
